<compile_context>
chip_gen: v6e
topology: v6e:2x2x1
jax: 0.10.0
libtpu: 0.0.40
codegen_flags: <defaults>
</compile_context>

<pallas_src>
import functools

import jax
import jax.numpy as jnp
from jax import lax
from jax.experimental import pallas as pl
from jax.experimental.pallas import tpu as pltpu


def _round_up(a: int, b: int) -> int:
    return ((a + b - 1) // b) * b


def _choose_tdx(dx: int, tdx: int) -> int:
    """dx tile: multiple of 128 (or full extent); >= 2 tiles when dx allows,
    so the "parallel" grid axis can be sharded across v7x's two TensorCores."""
    if dx <= 128:
        return dx                                  # single full-extent tile
    t = min(tdx, _round_up(dx, 128))
    t = max(128, (t // 128) * 128)                 # lane-aligned tile
    if pl.cdiv(dx, t) < 2:
        t = max(128, _round_up(pl.cdiv(dx, 2), 128))
    return t


def _fro_loss_kernel(w_ref, yt_ref, x_ref, out_ref, acc_ref, *,
                     inv_n, n_total, dx_total, tn, tdx, mask_n, mask_dx):
    """One (dx-tile j, N-chunk k) grid step.

    w_ref:   (dy, tdx)  W dtype        -- resident W tile for this j
    yt_ref:  (dy, tn)   y dtype        -- lane-dense y^T chunk
    x_ref:   (tn, tdx)  X dtype        -- batch chunk of X
    out_ref: (1, 1)     float32 (SMEM) -- partial loss for dx-tile j
    acc_ref: (dy, tdx)  float32 (VMEM) -- running y^T X accumulator for tile j
    """
    j = pl.program_id(0)  # dx tile (parallel)
    k = pl.program_id(1)  # N chunk (reduction axis, last / fastest-varying)

    @pl.when(k == 0)
    def _():
        acc_ref[...] = jnp.zeros_like(acc_ref)

    yt = yt_ref[...]
    x = x_ref[...]
    if mask_n:
        # The last N chunk reads past the end of X / y^T (edge-block padding
        # is unspecified, possibly NaN): zero *both* operands on the invalid
        # contraction positions so they contribute exactly 0.
        valid_rows = n_total - k * tn
        lane = lax.broadcasted_iota(jnp.int32, yt.shape, 1)
        yt = jnp.where(lane < valid_rows, yt, 0)
        row = lax.broadcasted_iota(jnp.int32, x.shape, 0)
        x = jnp.where(row < valid_rows, x, 0)

    # Partial cross-covariance: (dy, tn) @ (tn, tdx) -> (dy, tdx), f32 accum.
    acc_ref[...] += lax.dot_general(
        yt, x,
        dimension_numbers=(((1,), (0,)), ((), ())),
        preferred_element_type=jnp.float32,
    )

    @pl.when(k == pl.num_programs(1) - 1)
    def _():
        diff = w_ref[...].astype(jnp.float32) - acc_ref[...] * inv_n
        if mask_dx:
            # Last dx tile: ignore columns beyond the true dx (garbage in the
            # edge block of W / X only ever lands in these columns).
            valid_cols = dx_total - j * tdx
            col = lax.broadcasted_iota(jnp.int32, diff.shape, 1)
            diff = jnp.where(col < valid_cols, diff, 0.0)
        out_ref[0, 0] = 0.5 * jnp.sum(diff * diff)


def fro_loss_pallas(
    W,
    X,
    y,
    *,
    tn=1024,                 # batch (N) chunk size = MXU contraction depth
    tdx=512,                 # dx tile size, caps resident W/acc VMEM
    x_buffers=2,             # set 3 to deepen X pipelining if DMA is exposed
    vmem_limit_bytes=None,   # raise scoped-VMEM limit if larger tiles used
):
    N, dx = X.shape
    n2, dy = y.shape
    assert n2 == N, "X and y must share the batch dimension"
    assert W.shape == (dy, dx), "W must be (dy, dx)"
    assert N > 0, "fro_loss is undefined for an empty batch (N == 0)"

    inv_n = 1.0 / N

    # Batch chunk: full extent if it fits, else a multiple of 128 (also a
    # multiple of every dtype's sublane pack: 8 f32 / 16 bf16 / 32 int8-fp8).
    if N <= tn:
        tn_eff = N
    else:
        tn_eff = max(128, (tn // 128) * 128)
    n_k = pl.cdiv(N, tn_eff)
    mask_n = (n_k * tn_eff != N)

    tdx_eff = _choose_tdx(dx, tdx)
    n_j = pl.cdiv(dx, tdx_eff)
    mask_dx = (n_j * tdx_eff != dx)

    # Pre-transpose y (tiny: N x dy) so its blocks are lane-dense; X and W are
    # passed through untouched -- no cast, no pad, no extra HBM traffic.
    yt = jnp.transpose(y)  # (dy, N)

    kernel = functools.partial(
        _fro_loss_kernel,
        inv_n=inv_n, n_total=N, dx_total=dx,
        tn=tn_eff, tdx=tdx_eff, mask_n=mask_n, mask_dx=mask_dx,
    )

    x_spec_kwargs = {}
    if x_buffers != 2:
        x_spec_kwargs = dict(pipeline_mode=pl.Buffered(x_buffers))

    cost = pl.CostEstimate(
        flops=2 * N * dy * dx + 3 * dy * dx,
        transcendentals=0,
        bytes_accessed=(
            N * dx * X.dtype.itemsize            # X streamed once
            + n_j * N * dy * y.dtype.itemsize    # y re-streamed per dx tile
            + dy * dx * W.dtype.itemsize         # W read once
            + n_j * 4                            # per-tile partial losses
        ),
    )

    partial = pl.pallas_call(
        kernel,
        out_shape=jax.ShapeDtypeStruct((n_j, 1), jnp.float32),
        grid_spec=pltpu.PrefetchScalarGridSpec(
            num_scalar_prefetch=0,
            grid=(n_j, n_k),
            in_specs=[
                # W: (dy, tdx) tile, resident across the whole N reduction.
                pl.BlockSpec((dy, tdx_eff), lambda j, k: (0, j)),
                # y^T: (dy, tn) lane-dense chunk along the sample axis.
                pl.BlockSpec((dy, tn_eff), lambda j, k: (0, k)),
                # X: (tn, tdx) chunk along the sample axis.
                pl.BlockSpec((tn_eff, tdx_eff), lambda j, k: (k, j),
                             **x_spec_kwargs),
            ],
            out_specs=pl.BlockSpec(
                (1, 1), lambda j, k: (j, 0), memory_space=pltpu.SMEM
            ),
            scratch_shapes=[pltpu.VMEM((dy, tdx_eff), jnp.float32)],
        ),
        compiler_params=pltpu.CompilerParams(
            dimension_semantics=("parallel", "arbitrary"),
            vmem_limit_bytes=vmem_limit_bytes,
        ),
        cost_estimate=cost,
    )(W, yt, X)

    # Sum the per-dx-tile partial losses -> scalar Frobenius loss.
    return jnp.sum(partial)


if __name__ == "__main__":
    key = jax.random.PRNGKey(0)
    keys = jax.random.split(key, 6)

    def ref_loss(W, X, y):
        n = y.shape[0]
        cc = jnp.dot(y.T, X, precision=lax.Precision.HIGHEST) / n
        return 0.5 * jnp.sum((W - cc) ** 2)

    # Small deterministic shapes consistent with the module's forward pass.
    N, dx, dy = 16, 32, 4
    W = jax.random.normal(keys[0], (dy, dx), dtype=jnp.float32)
    X = jax.random.normal(keys[1], (N, dx), dtype=jnp.float32)
    y = jax.random.normal(keys[2], (N, dy), dtype=jnp.float32)
    loss = jax.block_until_ready(fro_loss_pallas(W, X, y))
    ref = ref_loss(W, X, y)
    assert jnp.allclose(loss, ref, rtol=1e-4, atol=1e-4), (loss, ref)

    # Ragged shapes: exercises in-kernel tail masking and the multi-tile
    # (megacore-friendly) dx grid, with no wrapper-side padding of X.
    N2, dx2, dy2 = 300, 200, 3
    W2 = jax.random.normal(keys[3], (dy2, dx2), dtype=jnp.float32)
    X2 = jax.random.normal(keys[4], (N2, dx2), dtype=jnp.float32)
    y2 = jax.random.normal(keys[5], (N2, dy2), dtype=jnp.float32)
    loss2 = jax.block_until_ready(fro_loss_pallas(W2, X2, y2, tn=128, tdx=128))
    ref2 = ref_loss(W2, X2, y2)
    assert jnp.allclose(loss2, ref2, rtol=1e-3, atol=1e-4), (loss2, ref2)

    print("KERNEL_OK")
</pallas_src>

<mosaic_0001>
module attributes {stable_mosaic.version = 11 : i64} {
  func.func @_fro_loss_kernel(%arg0: i32, %arg1: i32, %arg2: memref<4x32xf32, #tpu.memory_space<vmem>>, %arg3: memref<4x16xf32, #tpu.memory_space<vmem>>, %arg4: memref<16x32xf32, #tpu.memory_space<vmem>>, %arg5: memref<1x1xf32, #tpu.memory_space<smem>>, %arg6: memref<4x32xf32, #tpu.memory_space<vmem>>) attributes {dimension_semantics = [#tpu.dimension_semantics<parallel>, #tpu.dimension_semantics<arbitrary>], iteration_bounds = array<i64: 1, 1>, scalar_prefetch = 0 : i64, scratch_operands = 1 : i64, tpu.core_type = #tpu.core_type<tc>, window_params = [{transform_indices = @transform_0, window_bounds = array<i64: 4, 32>}, {transform_indices = @transform_1, window_bounds = array<i64: 4, 16>}, {transform_indices = @transform_2, window_bounds = array<i64: 16, 32>}, {transform_indices = @transform_3, window_bounds = array<i64: 1, 1>}]} {
    %c0_i32 = arith.constant 0 : i32
    %0 = arith.cmpi eq, %arg1, %c0_i32 : i32
    %1 = arith.extui %0 : i1 to i32
    %c0_i32_0 = arith.constant 0 : i32
    %2 = arith.cmpi ne, %1, %c0_i32_0 : i32
    scf.if %2 {
      %cst_10 = arith.constant 0.000000e+00 : f32
      %12 = vector.broadcast %cst_10 : f32 to vector<4x32xf32>
      %c0_11 = arith.constant 0 : index
      %c0_12 = arith.constant 0 : index
      %13 = vector.load %arg6[%c0_11, %c0_12] : memref<4x32xf32, #tpu.memory_space<vmem>>, vector<4x32xf32>
      tpu.vector_store %arg6[%c0_11, %c0_12], %12 {strides = array<i32>} : memref<4x32xf32, #tpu.memory_space<vmem>>, vector<4x32xf32>,
    } else {
    }
    %c0 = arith.constant 0 : index
    %c0_1 = arith.constant 0 : index
    %3 = vector.load %arg3[%c0, %c0_1] : memref<4x16xf32, #tpu.memory_space<vmem>>, vector<4x16xf32>
    %c0_2 = arith.constant 0 : index
    %c0_3 = arith.constant 0 : index
    %4 = vector.load %arg4[%c0_2, %c0_3] : memref<16x32xf32, #tpu.memory_space<vmem>>, vector<16x32xf32>
    %c0_4 = arith.constant 0 : index
    %c0_5 = arith.constant 0 : index
    %5 = vector.load %arg6[%c0_4, %c0_5] : memref<4x32xf32, #tpu.memory_space<vmem>>, vector<4x32xf32>
    %cst = arith.constant dense<0.000000e+00> : vector<4x32xf32>
    %6 = tpu.matmul %3, %4, %cst {dimension_numbers = #tpu.dot_dimension_numbers<[1], [0], [0], [1], [0, 0, 1, 1], [], []>} : vector<4x16xf32>, vector<16x32xf32>, vector<4x32xf32> -> vector<4x32xf32>
    %7 = arith.addf %5, %6 : vector<4x32xf32>
    %c0_6 = arith.constant 0 : index
    %c0_7 = arith.constant 0 : index
    %8 = vector.load %arg6[%c0_6, %c0_7] : memref<4x32xf32, #tpu.memory_space<vmem>>, vector<4x32xf32>
    tpu.vector_store %arg6[%c0_6, %c0_7], %7 {strides = array<i32>} : memref<4x32xf32, #tpu.memory_space<vmem>>, vector<4x32xf32>,
    %c0_i32_8 = arith.constant 0 : i32
    %9 = arith.cmpi eq, %arg1, %c0_i32_8 : i32
    %10 = arith.extui %9 : i1 to i32
    %c0_i32_9 = arith.constant 0 : i32
    %11 = arith.cmpi ne, %10, %c0_i32_9 : i32
    scf.if %11 {
      %c0_10 = arith.constant 0 : index
      %c0_11 = arith.constant 0 : index
      %12 = vector.load %arg2[%c0_10, %c0_11] : memref<4x32xf32, #tpu.memory_space<vmem>>, vector<4x32xf32>
      %c0_12 = arith.constant 0 : index
      %c0_13 = arith.constant 0 : index
      %13 = vector.load %arg6[%c0_12, %c0_13] : memref<4x32xf32, #tpu.memory_space<vmem>>, vector<4x32xf32>
      %cst_14 = arith.constant 6.250000e-02 : f32
      %14 = vector.broadcast %cst_14 : f32 to vector<4x32xf32>
      %15 = arith.mulf %13, %14 : vector<4x32xf32>
      %16 = arith.subf %12, %15 : vector<4x32xf32>
      %17 = arith.mulf %16, %16 : vector<4x32xf32>
      %18 = vector.shape_cast %17 : vector<4x32xf32> to vector<1x4x32xf32>
      %cst_15 = arith.constant dense<0.000000e+00> : vector<1xf32>
      %19 = vector.multi_reduction <add>, %18, %cst_15 [1, 2] : vector<1x4x32xf32> to vector<1xf32>
      %20 = vector.shape_cast %19 : vector<1xf32> to vector<1x1x1xf32>
      %21 = vector.extract %20[0, 0, 0] : f32 from vector<1x1x1xf32>
      %cst_16 = arith.constant 5.000000e-01 : f32
      %22 = arith.mulf %cst_16, %21 : f32
      %c0_17 = arith.constant 0 : index
      %c0_18 = arith.constant 0 : index
      %23 = memref.load %arg5[%c0_17, %c0_18] : memref<1x1xf32, #tpu.memory_space<smem>>
      memref.store %22, %arg5[%c0_17, %c0_18] : memref<1x1xf32, #tpu.memory_space<smem>>
    } else {
    }
    return
  }
  func.func @transform_0(%arg0: i32, %arg1: i32) -> (i32, i32) {
    %c0_i32 = arith.constant 0 : i32
    %c0_i32_0 = arith.constant 0 : i32
    return %c0_i32, %arg0 : i32, i32
  }
  func.func @transform_1(%arg0: i32, %arg1: i32) -> (i32, i32) {
    %c0_i32 = arith.constant 0 : i32
    %c0_i32_0 = arith.constant 0 : i32
    return %c0_i32, %arg1 : i32, i32
  }
  func.func @transform_2(%arg0: i32, %arg1: i32) -> (i32, i32) {
    %c0_i32 = arith.constant 0 : i32
    return %arg1, %arg0 : i32, i32
  }
  func.func @transform_3(%arg0: i32, %arg1: i32) -> (i32, i32) {
    %c0_i32 = arith.constant 0 : i32
    %c0_i32_0 = arith.constant 0 : i32
    return %arg0, %c0_i32 : i32, i32
  }
}

</mosaic_0001>

<llo_original>
// kernel: tpu_custom_call.1
$region0: #{tpu_custom_call.1}
  #allocation0 [shape = 'u32[]', space=smem, size = 0x4, offset = 0x4, fixed_abs, tag = 'smem constant byte address 0x4 - core index']
  #allocation1 [shape = 'u32[144,128]{1,0:T(1,128)}', space=vmem, size = 0x12000, scoped, tag = 'internal scratch']
  #allocation2 [shape = 'f32[4,32]{1,0:T(4,128)}', space=vmem, size = 0x800, scoped, tag = 'scratch operand']
  %s0 = inlined_call_operand.hbm [shape: f32[4,32], index: 0, kind: input, shape index: {}]
  %s1 = inlined_call_operand.hbm [shape: f32[4,16], index: 1, kind: input, shape index: {}]
  %s2 = inlined_call_operand.hbm [shape: f32[16,32], index: 2, kind: input, shape index: {}]
  %s3 = inlined_call_operand.hbm [shape: f32[1,1], index: 3, kind: output, shape index: {}]
  %s4 = sld [smem:[#allocation0]]
  $region42: #{tpu_custom_call.1} parent=0
    _
  %s6 = ssub.s32 1, %s4
  %s7 = scalar_select 0, %s6, %s4
  $region1: #{tpu_custom_call.1} parent=0
    #allocation3 [shape = 'u8[2048]{0}', space=vmem, size = 0x800, scoped, tag = 'input window, operand 0, single buffered']
    #allocation4 [shape = 's32[1]{0}', space=sflag, size = 0x4, scoped, tag = 'scoped memory for tpu_custom_call.1']
    #allocation5 [shape = 's32[1]{0}', space=sflag, size = 0x4, scoped, tag = 'scoped memory for tpu_custom_call.1']
    #allocation6 [shape = 'u8[2048]{0}', space=vmem, size = 0x800, scoped, tag = 'input window, operand 1, single buffered']
    #allocation7 [shape = 's32[1]{0}', space=sflag, size = 0x4, scoped, tag = 'scoped memory for tpu_custom_call.1']
    #allocation8 [shape = 'u8[8192]{0}', space=vmem, size = 0x2000, scoped, tag = 'input window, operand 2, single buffered']
    #allocation9 [shape = 'u8[512]{0}', space=smem, size = 0x200, scoped, tag = 'output window, operand 0, single buffered']
    %8 = vsyncpa [#allocation4], 0
    %9 = vsyncpa [#allocation7], 0
    %10 = vsyncpa [#allocation5], 0
    // Predicated region
    $region2: #{tpu_custom_call.1} parent=1 // pred_check
      _
    $region3: #{tpu_custom_call.1} parent=1 // pred_check_branch
      %12 = sbr.rel (0) target = $region5
    $region4: #{tpu_custom_call.1} parent=1 // pred_region
      %s14 = ssub.s32 64, 64
      %15 = vsyncadd [#allocation4], %s14
      %s17 = sshll.u32 [#allocation3], 4
      %s18 = int_to_ptr.vmem [resolvable:$true] %s17
      %20 = dma.hbm_to_vmem [thread:$0]  %s0, 64, %s18, [#allocation4]
    $region5: #{tpu_custom_call.1} parent=1 // pred_fallthru
      _
    // Predicated region
    $region6: #{tpu_custom_call.1} parent=1 // pred_check
      _
    $region7: #{tpu_custom_call.1} parent=1 // pred_check_branch
      %22 = sbr.rel (0) target = $region9
    $region8: #{tpu_custom_call.1} parent=1 // pred_region
      %s24 = ssub.s32 64, 64
      %25 = vsyncadd [#allocation7], %s24
      %s27 = sshll.u32 [#allocation6], 4
      %s28 = int_to_ptr.vmem [resolvable:$true] %s27
      %30 = dma.hbm_to_vmem [thread:$0]  %s1, 64, %s28, [#allocation7]
    $region9: #{tpu_custom_call.1} parent=1 // pred_fallthru
      _
    // Predicated region
    $region10: #{tpu_custom_call.1} parent=1 // pred_check
      _
    $region11: #{tpu_custom_call.1} parent=1 // pred_check_branch
      %32 = sbr.rel (0) target = $region13
    $region12: #{tpu_custom_call.1} parent=1 // pred_region
      %s34 = ssub.s32 256, 256
      %35 = vsyncadd [#allocation7], %s34
      %s36 = sshll.u32 [#allocation8], 4
      %s37 = int_to_ptr.vmem [resolvable:$true] %s36
      %42 = dma.hbm_to_vmem [thread:$0]  %s2, 256, %s37, [#allocation7], 128, 128, 8
    $region13: #{tpu_custom_call.1} parent=1 // pred_fallthru
      _
    // Predicated region
    $region14: #{tpu_custom_call.1} parent=1 // pred_check
      _
    $region15: #{tpu_custom_call.1} parent=1 // pred_check_branch
      %44 = sbr.rel (0) target = $region17
    $region16: #{tpu_custom_call.1} parent=1 // pred_region
      %45 = dma.done [#allocation4], 64
    $region17: #{tpu_custom_call.1} parent=1 // pred_fallthru
      _
    // Predicated region
    $region18: #{tpu_custom_call.1} parent=1 // pred_check
      _
    $region19: #{tpu_custom_call.1} parent=1 // pred_check_branch
      %47 = sbr.rel (0) target = $region21
    $region20: #{tpu_custom_call.1} parent=1 // pred_region
      %48 = dma.done [#allocation7], 64
    $region21: #{tpu_custom_call.1} parent=1 // pred_fallthru
      _
    // Predicated region
    $region22: #{tpu_custom_call.1} parent=1 // pred_check
      _
    $region23: #{tpu_custom_call.1} parent=1 // pred_check_branch
      %50 = sbr.rel (0) target = $region25
    $region24: #{tpu_custom_call.1} parent=1 // pred_region
      %51 = dma.done [#allocation7], 256
    $region25: #{tpu_custom_call.1} parent=1 // pred_fallthru
      _
    %p52 = scmp.eq.s32.totalorder 0, 0
    // Predicated region
    $region26: #{tpu_custom_call.1} parent=1 // pred_check
      %p53 = pneg %p52
    $region27: #{tpu_custom_call.1} parent=1 // pred_check_branch
      %55 = sbr.rel (%p53) target = $region29
    $region28: #{tpu_custom_call.1} parent=1 // pred_region
      %vm56 = vcmask 257024
      %57 = vst.msk [vmem:[#allocation2] sm:$0xf] %vm56, 0.0
    $region29: #{tpu_custom_call.1} parent=1 // pred_fallthru
      _
    %v58 = vld [vmem:[#allocation6] sm:$0xf]
    %v59 = vld [vmem:[#allocation8] sm:$0xff]
    %v60 = vld [vmem:[#allocation8 + $0x8] sm:$0xff]
    %v61 = vld [vmem:[#allocation2] sm:$0xf]
    %vm62 = vcmask 130048
    %v64 = vsel %vm62, %v58, 0
    %66 = vmatprep.subr.mxu0 0.0
    %67 = vmatpush1.msra.mxu0 0.0
    %68 = vmatprep.subr.mxu0 0.0
    %69 = vmatpush1.msra.mxu0 0.0
    %70 = vmatprep.subr.mxu0 0.0
    %71 = vmatpush1.msra.mxu0 0.0
    %72 = vmatprep.subr.mxu0 0.0
    %73 = vmatpush1.msra.mxu0 0.0
    %74 = vmatprep.subr.mxu0 0.0
    %75 = vmatpush1.msra.mxu0 0.0
    %76 = vmatprep.subr.mxu0 0.0
    %77 = vmatpush1.msra.mxu0 0.0
    %78 = vmatprep.subr.mxu0 0.0
    %79 = vmatpush1.msra.mxu0 0.0
    %80 = vmatprep.subr.mxu0 0.0
    %81 = vmatpush1.msra.mxu0 0.0
    %82 = vmatprep.subr.mxu0 0.0
    %83 = vmatpush1.msra.mxu0 0.0
    %84 = vmatprep.subr.mxu0 0.0
    %85 = vmatpush1.msra.mxu0 0.0
    %86 = vmatprep.subr.mxu0 0.0
    %87 = vmatpush1.msra.mxu0 0.0
    %88 = vmatprep.subr.mxu0 0.0
    %89 = vmatpush1.msra.mxu0 0.0
    %90 = vmatprep.subr.mxu0 0.0
    %91 = vmatpush1.msra.mxu0 0.0
    %92 = vmatprep.subr.mxu0 0.0
    %93 = vmatpush1.msra.mxu0 0.0
    %94 = vmatprep.subr.mxu0 0.0
    %95 = vmatpush1.msra.mxu0 %v60
    %96 = vmatprep.subr.mxu0 0.0
    %97 = vmatpush1.msra.mxu0 %v59
    %98 = vmatprep.subr.mxu0 0.0
    %99 = vmatpush2.msra.mxu0 0.0
    %100 = vmatprep.subr.mxu0 0.0
    %101 = vmatpush2.msra.mxu0 0.0
    %102 = vmatprep.subr.mxu0 0.0
    %103 = vmatpush2.msra.mxu0 0.0
    %104 = vmatprep.subr.mxu0 0.0
    %105 = vmatpush2.msra.mxu0 0.0
    %106 = vmatprep.subr.mxu0 0.0
    %107 = vmatpush2.msra.mxu0 0.0
    %108 = vmatprep.subr.mxu0 0.0
    %109 = vmatpush2.msra.mxu0 0.0
    %110 = vmatprep.subr.mxu0 0.0
    %111 = vmatpush2.msra.mxu0 0.0
    %112 = vmatprep.subr.mxu0 0.0
    %113 = vmatpush2.msra.mxu0 0.0
    %114 = vmatprep.subr.mxu0 0.0
    %115 = vmatpush2.msra.mxu0 0.0
    %116 = vmatprep.subr.mxu0 0.0
    %117 = vmatpush2.msra.mxu0 0.0
    %118 = vmatprep.subr.mxu0 0.0
    %119 = vmatpush2.msra.mxu0 0.0
    %120 = vmatprep.subr.mxu0 0.0
    %121 = vmatpush2.msra.mxu0 0.0
    %122 = vmatprep.subr.mxu0 0.0
    %123 = vmatpush2.msra.mxu0 0.0
    %124 = vmatprep.subr.mxu0 0.0
    %125 = vmatpush2.msra.mxu0 0.0
    %126 = vmatprep.subr.mxu0 0.0
    %127 = vmatpush2.msra.mxu0 0.0
    %128 = vmatprep.subr.mxu0 0.0
    %129 = vmatpush2.msra.mxu0 0.0
    %130 = vmatprep.mubr.f32.mxu0 0.0
    %131 = vmatmul.mubr.f32.gmra.mxu0 %v64
    %v132 = vpop.f32.mrf.mxu0
    %v133 = vadd.f32 0.0, %v132
    %v134 = vpop.f32.mrf.mxu0
    %135 = vdwg.mxu0
    %v136 = vadd.f32 %v61, %v133
    %vm137 = vcmask 257024
    %138 = vst.msk [vmem:[#allocation2] sm:$0xf] %vm137, %v136
    // Predicated region
    $region30: #{tpu_custom_call.1} parent=1 // pred_check
      %p139 = pneg %p52
    $region31: #{tpu_custom_call.1} parent=1 // pred_check_branch
      %141 = sbr.rel (%p139) target = $region33
    $region32: #{tpu_custom_call.1} parent=1 // pred_region
      %v142 = vld [vmem:[#allocation3] sm:$0xf]
      %v143 = vld [vmem:[#allocation2] sm:$0xf]
      %v144 = vmul.f32 %v143, 0.0625
      %v145 = vsub.f32 %v142, %v144
      %v146 = vmul.f32 %v145, %v145
      %v147 = vsel %vm137, %v146, 0.0
      %148 = vadd.xlane.f32.xlu0 %v147
      %v149 = vpop.xlane.xlu0 %148
      %v150 = vrot.slane %v149, 4
      %v151 = vadd.f32 %v149, %v150
      %v152 = vrot.slane %v151, 2
      %v153 = vadd.f32 %v151, %v152
      %v154 = vrot.slane %v153, 1
      %v155 = vadd.f32 %v153, %v154
      %s156 = vtos %v155
      %s157 = smul.f32 %s156, 0.5
      %s158 = scalar_lea.smem [#allocation9], 0
      %159 = sst [smem:[%s158]] %s157
    $region33: #{tpu_custom_call.1} parent=1 // pred_fallthru
      _
    // Predicated region
    $region34: #{tpu_custom_call.1} parent=1 // pred_check
      _
    $region35: #{tpu_custom_call.1} parent=1 // pred_check_branch
      %161 = sbr.rel (0) target = $region37
    $region36: #{tpu_custom_call.1} parent=1 // pred_region
      %s163 = ssub.s32 16, 16
      %164 = vsyncadd [#allocation5], %s163
      %167 = dma.smem_to_hbm [#allocation9], 16, %s3, [#allocation5]
    $region37: #{tpu_custom_call.1} parent=1 // pred_fallthru
      _
    // Predicated region
    $region38: #{tpu_custom_call.1} parent=1 // pred_check
      _
    $region39: #{tpu_custom_call.1} parent=1 // pred_check_branch
      %169 = sbr.rel (0) target = $region41
    $region40: #{tpu_custom_call.1} parent=1 // pred_region
      %170 = dma.done [#allocation5], 16
    $region41: #{tpu_custom_call.1} parent=1 // pred_fallthru
      _
    %171 = sfence
    %172 = vsyncpa [#allocation4], 1
    %173 = vsyncpa [#allocation7], 1
    %174 = vsyncpa [#allocation5], 1

</llo_original>
